<compile_context>
chip_gen: v7x
topology: tpu7x:2x2x1
jax: 0.10.0
libtpu: 0.0.40
codegen_flags: <defaults>
</compile_context>

<pallas_src>
import functools

import jax
import jax.numpy as jnp
from jax.experimental import pallas as pl
from jax.experimental.pallas import tpu as pltpu

_TARGET_BLOCK_BYTES = 4 * 1024 * 1024    # ~4 MiB per input block (HBM roofline sweet spot)
_SMALL_FALLBACK_ELEMS = 16 * 1024        # below this, fused XLA beats kernel launch overhead
_VMEM_LIMIT_BYTES = 32 * 1024 * 1024     # 2 inputs x 2 bufs x 4 MiB = 16 MiB << 32 MiB


def _cdiv(a: int, b: int) -> int:
    return -(-a // b)


def _round_up(x: int, m: int) -> int:
    return _cdiv(x, m) * m


def _partial_sum_8(x):
    """(R, L) -> (8, L): sum whole (8, 128)-tiled vreg rows (pure VPU adds, no XLU)."""
    r, l = x.shape
    return jnp.sum(x.reshape(r // 8, 8, l), axis=0)


def _contrastive_loss_kernel(sim_ref, lab_ref, out_ref, *, margin: float,
                             num_tiles: int, block_rows: int, valid_rows_last: int):
    """One grid step: elementwise loss on a (block_rows, LANES) tile, reduced to
    a lane-dense (8, LANES) partial sum.  The last tile masks its invalid rows."""
    sim = sim_ref[...].astype(jnp.float32)
    lab = lab_ref[...].astype(jnp.float32)

    clamped = jnp.maximum(jnp.float32(margin) - sim, jnp.float32(0.0))
    loss = (1.0 - lab) * (sim * sim) + lab * (clamped * clamped)

    if valid_rows_last == block_rows:
        # Every tile is fully valid: no masking anywhere.
        out_ref[...] = _partial_sum_8(loss)
    else:
        # Only the last (boundary) tile pays for the mask.  Its out-of-bounds
        # rows hold unspecified data, so mask the *loss*, not the inputs.
        is_last = pl.program_id(0) == num_tiles - 1

        @pl.when(jnp.logical_not(is_last))
        def _():
            out_ref[...] = _partial_sum_8(loss)

        @pl.when(is_last)
        def _():
            row = jax.lax.broadcasted_iota(jnp.int32, loss.shape, 0)
            masked = jnp.where(row < valid_rows_last, loss, jnp.float32(0.0))
            out_ref[...] = _partial_sum_8(masked)


def contrastive_loss(similarity: jax.Array, label: jax.Array,
                     margin: float = 0.5) -> jax.Array:
    """Pallas implementation of ContrastiveLoss.forward; returns a scalar."""
    assert similarity.shape == label.shape
    total = similarity.size

    # Tiny inputs: fixed pallas_call overhead dominates; use the fused XLA expr.
    if total < _SMALL_FALLBACK_ELEMS:
        sim32 = similarity.astype(jnp.float32)
        lab32 = label.astype(jnp.float32)
        loss = (1.0 - lab32) * sim32 * sim32 \
             + lab32 * jnp.maximum(jnp.float32(margin) - sim32, 0.0) ** 2
        return jnp.mean(loss)

    sim_flat = similarity.reshape(-1)
    lab_flat = label.reshape(-1)
    # Keep labels narrow/native; only promote dtypes with awkward TPU tiling.
    if jnp.dtype(lab_flat.dtype).itemsize < 2:
        lab_flat = lab_flat.astype(jnp.bfloat16)

    # Adaptive lane width: prefer 512, avoid any pad whenever 128 | total.
    if total % 512 == 0:
        lanes = 512
    elif total % 256 == 0:
        lanes = 256
    else:
        lanes = 128

    rows = _cdiv(total, lanes)
    pad = rows * lanes - total
    if pad:
        # Rare case (total not a multiple of 128): pad only to the next lane
        # multiple.  Zero padding contributes exactly 0 loss (label == 0).
        sim_flat = jnp.pad(sim_flat, (0, pad))
        lab_flat = jnp.pad(lab_flat, (0, pad))

    sim2d = sim_flat.reshape(rows, lanes)
    lab2d = lab_flat.reshape(rows, lanes)

    # Byte-targeted block: ~4 MiB of the similarity stream per block, but no
    # bigger than half the rows (>= 2 parallel tiles -> both v7x TensorCores).
    sim_itemsize = jnp.dtype(similarity.dtype).itemsize
    lab_itemsize = jnp.dtype(lab_flat.dtype).itemsize
    target_rows = _round_up(max(32, _TARGET_BLOCK_BYTES // (lanes * sim_itemsize)), 32)
    half_rows = _round_up(_cdiv(rows, 2), 32)
    block_rows = int(min(target_rows, half_rows))
    num_tiles = _cdiv(rows, block_rows)
    valid_rows_last = rows - (num_tiles - 1) * block_rows

    kernel = functools.partial(
        _contrastive_loss_kernel,
        margin=float(margin),
        num_tiles=num_tiles,
        block_rows=block_rows,
        valid_rows_last=valid_rows_last,
    )

    bytes_accessed = total * sim_itemsize + total * lab_itemsize + num_tiles * 8 * lanes * 4

    partials = pl.pallas_call(
        kernel,
        out_shape=jax.ShapeDtypeStruct((num_tiles * 8, lanes), jnp.float32),
        grid=(num_tiles,),
        in_specs=[
            pl.BlockSpec((block_rows, lanes), lambda i: (i, 0)),
            pl.BlockSpec((block_rows, lanes), lambda i: (i, 0)),
        ],
        out_specs=pl.BlockSpec((8, lanes), lambda i: (i, 0)),
        compiler_params=pltpu.CompilerParams(
            dimension_semantics=("parallel",),        # independent tiles: megacore-safe
            vmem_limit_bytes=_VMEM_LIMIT_BYTES,
        ),
        cost_estimate=pl.CostEstimate(
            flops=9 * total,
            transcendentals=0,
            bytes_accessed=int(bytes_accessed),
        ),
    )(sim2d, lab2d)

    # Tiny final cross-lane reduction + mean in plain JAX (divide by TRUE count).
    return jnp.sum(partials) / jnp.float32(total)


def _reference(similarity, label, margin=0.5):
    loss = (1.0 - label) * similarity ** 2 \
         + label * jnp.maximum(margin - similarity, 0.0) ** 2
    return jnp.mean(loss)


if __name__ == "__main__":
    key = jax.random.PRNGKey(0)

    # (shape, label dtype):
    #  * (16, 128)  -> tiny: fused-XLA fallback path
    #  * (96, 512)  -> kernel path, zero-copy reshape, 2 parallel tiles, row-masked tail
    #  * (123, 321) -> kernel path, ragged total (small pad), narrow bf16 labels
    cases = [
        ((16, 128), jnp.float32),
        ((96, 512), jnp.float32),
        ((123, 321), jnp.bfloat16),
    ]

    for shape, lab_dtype in cases:
        key, k_sim, k_lab = jax.random.split(key, 3)
        similarity = jax.random.uniform(k_sim, shape, dtype=jnp.float32,
                                        minval=-1.0, maxval=1.0)
        label = jax.random.bernoulli(k_lab, p=0.5, shape=shape).astype(lab_dtype)

        out = jax.block_until_ready(contrastive_loss(similarity, label, margin=0.5))
        ref = _reference(similarity, label.astype(jnp.float32), margin=0.5)
        assert jnp.allclose(out, ref, rtol=1e-4, atol=1e-6), (shape, out, ref)

    print("KERNEL_OK")
</pallas_src>

<mosaic_0001>
module attributes {stable_mosaic.version = 11 : i64} {
  func.func @_contrastive_loss_kernel(%arg0: i32, %arg1: memref<64x512xf32, #tpu.memory_space<vmem>>, %arg2: memref<64x512xf32, #tpu.memory_space<vmem>>, %arg3: memref<8x512xf32, #tpu.memory_space<vmem>>) attributes {dimension_semantics = [#tpu.dimension_semantics<parallel>], iteration_bounds = array<i64: 2>, scalar_prefetch = 0 : i64, scratch_operands = 0 : i64, tpu.core_type = #tpu.core_type<tc>, window_params = [{transform_indices = @transform_0, window_bounds = array<i64: 64, 512>}, {transform_indices = @transform_1, window_bounds = array<i64: 64, 512>}, {transform_indices = @transform_2, window_bounds = array<i64: 8, 512>}]} {
    %c0 = arith.constant 0 : index
    %c0_0 = arith.constant 0 : index
    %0 = vector.load %arg1[%c0, %c0_0] : memref<64x512xf32, #tpu.memory_space<vmem>>, vector<64x512xf32>
    %c0_1 = arith.constant 0 : index
    %c0_2 = arith.constant 0 : index
    %1 = vector.load %arg2[%c0_1, %c0_2] : memref<64x512xf32, #tpu.memory_space<vmem>>, vector<64x512xf32>
    %cst = arith.constant 5.000000e-01 : f32
    %2 = vector.broadcast %cst : f32 to vector<64x512xf32>
    %3 = arith.subf %2, %0 : vector<64x512xf32>
    %cst_3 = arith.constant 0.000000e+00 : f32
    %4 = vector.broadcast %cst_3 : f32 to vector<64x512xf32>
    %5 = arith.maximumf %3, %4 : vector<64x512xf32>
    %cst_4 = arith.constant 1.000000e+00 : f32
    %6 = vector.broadcast %cst_4 : f32 to vector<64x512xf32>
    %7 = arith.subf %6, %1 : vector<64x512xf32>
    %8 = arith.mulf %0, %0 : vector<64x512xf32>
    %9 = arith.mulf %7, %8 : vector<64x512xf32>
    %10 = arith.mulf %5, %5 : vector<64x512xf32>
    %11 = arith.mulf %1, %10 : vector<64x512xf32>
    %12 = arith.addf %9, %11 : vector<64x512xf32>
    %c1_i32 = arith.constant 1 : i32
    %13 = arith.cmpi eq, %arg0, %c1_i32 : i32
    %true = arith.constant true
    %14 = arith.xori %13, %true : i1
    %15 = arith.extui %14 : i1 to i32
    %c0_i32 = arith.constant 0 : i32
    %16 = arith.cmpi ne, %15, %c0_i32 : i32
    scf.if %16 {
      %19 = vector.shape_cast %12 : vector<64x512xf32> to vector<8x8x512xf32>
      %cst_6 = arith.constant dense<0.000000e+00> : vector<8x512xf32>
      %20 = vector.multi_reduction <add>, %19, %cst_6 [0] : vector<8x8x512xf32> to vector<8x512xf32>
      %c0_7 = arith.constant 0 : index
      %c0_8 = arith.constant 0 : index
      %21 = vector.load %arg3[%c0_7, %c0_8] : memref<8x512xf32, #tpu.memory_space<vmem>>, vector<8x512xf32>
      tpu.vector_store %arg3[%c0_7, %c0_8], %20 {strides = array<i32>} : memref<8x512xf32, #tpu.memory_space<vmem>>, vector<8x512xf32>,
    } else {
    }
    %17 = arith.extui %13 : i1 to i32
    %c0_i32_5 = arith.constant 0 : i32
    %18 = arith.cmpi ne, %17, %c0_i32_5 : i32
    scf.if %18 {
      %19 = tpu.iota {dimensions = array<i32: 0>} : vector<64x512xi32>
      %c32_i32 = arith.constant 32 : i32
      %20 = vector.broadcast %c32_i32 : i32 to vector<64x512xi32>
      %21 = arith.cmpi slt, %19, %20 : vector<64x512xi32>
      %cst_6 = arith.constant 0.000000e+00 : f32
      %22 = vector.broadcast %cst_6 : f32 to vector<64x512xf32>
      %23 = arith.select %21, %12, %22 : vector<64x512xi1>, vector<64x512xf32>
      %24 = vector.shape_cast %23 : vector<64x512xf32> to vector<8x8x512xf32>
      %cst_7 = arith.constant dense<0.000000e+00> : vector<8x512xf32>
      %25 = vector.multi_reduction <add>, %24, %cst_7 [0] : vector<8x8x512xf32> to vector<8x512xf32>
      %c0_8 = arith.constant 0 : index
      %c0_9 = arith.constant 0 : index
      %26 = vector.load %arg3[%c0_8, %c0_9] : memref<8x512xf32, #tpu.memory_space<vmem>>, vector<8x512xf32>
      tpu.vector_store %arg3[%c0_8, %c0_9], %25 {strides = array<i32>} : memref<8x512xf32, #tpu.memory_space<vmem>>, vector<8x512xf32>,
    } else {
    }
    return
  }
  func.func @transform_0(%arg0: i32) -> (i32, i32) {
    %c0_i32 = arith.constant 0 : i32
    %c0_i32_0 = arith.constant 0 : i32
    return %arg0, %c0_i32 : i32, i32
  }
  func.func @transform_1(%arg0: i32) -> (i32, i32) {
    %c0_i32 = arith.constant 0 : i32
    %c0_i32_0 = arith.constant 0 : i32
    return %arg0, %c0_i32 : i32, i32
  }
  func.func @transform_2(%arg0: i32) -> (i32, i32) {
    %c0_i32 = arith.constant 0 : i32
    %c0_i32_0 = arith.constant 0 : i32
    return %arg0, %c0_i32 : i32, i32
  }
}

</mosaic_0001>

<llo_original>
// kernel: tpu_custom_call.1
$region0: #{tpu_custom_call.1}
  #allocation0 [shape = 'u32[]', space=smem, size = 0x4, offset = 0x4, fixed_abs, tag = 'smem constant byte address 0x4 - core index']
  #allocation1 [shape = 'u32[144,128]{1,0:T(1,128)}', space=vmem, size = 0x12000, scoped, tag = 'internal scratch']
  %s0 = inlined_call_operand.hbm [shape: f32[96,512], index: 0, kind: input, shape index: {}]
  %s1 = inlined_call_operand.hbm [shape: f32[96,512], index: 1, kind: input, shape index: {}]
  %s2 = inlined_call_operand.hbm [shape: f32[16,512], index: 2, kind: output, shape index: {}]
  %s3 = sld [smem:[#allocation0]]
  $region57: #{tpu_custom_call.1} parent=0
    _
  %s5 = ssub.s32 1, %s3
  %s6 = scalar_select 0, %s5, %s3
  $region1: #{tpu_custom_call.1} parent=0
    #allocation2 [shape = 'u8[262144]{0}', space=vmem, size = 0x40000, scoped, tag = 'input window, operand 0']
    #allocation3 [shape = 's32[2]{0}', space=sflag, size = 0x8, scoped, tag = 'scoped memory for tpu_custom_call.1']
    #allocation4 [shape = 's32[2]{0}', space=sflag, size = 0x8, scoped, tag = 'scoped memory for tpu_custom_call.1']
    #allocation5 [shape = 'u8[262144]{0}', space=vmem, size = 0x40000, scoped, tag = 'input window, operand 1']
    #allocation6 [shape = 's32[2]{0}', space=sflag, size = 0x8, scoped, tag = 'scoped memory for tpu_custom_call.1']
    #allocation7 [shape = 'u8[32768]{0}', space=vmem, size = 0x8000, scoped, tag = 'output window, operand 0']
    %7 = vsyncpa [#allocation3], 0
    %s8 = scalar_lea.sflag [#allocation3], 1
    %9 = vsyncpa %s8, 0
    %10 = vsyncpa [#allocation6], 0
    %s11 = scalar_lea.sflag [#allocation6], 1
    %12 = vsyncpa %s11, 0
    %13 = vsyncpa [#allocation4], 0
    %s14 = scalar_lea.sflag [#allocation4], 1
    %15 = vsyncpa %s14, 0
    loop: start=0, step=1, limit=4
    $region2: #{tpu_custom_call.1} parent=1 // loop_pre_header
      _
    $region3: #{tpu_custom_call.1} parent=1 // loop_header
      %s17 = sphi 0, %s21
      %p18 = scmp.ge.s32.totalorder %s17, 4
      %s27 = sphi 0, %s29
      %s30 = sphi 0, %s27
      %s31 = sphi 0, %s30
      %s47 = sphi 0, %s31
      %s53 = sphi 0, %s55
      %s56 = sphi 0, %s53
      %s57 = sphi 0, %s56
      %s73 = sphi 0, %s57
      %s79 = sphi 0, %s81
      %s82 = sphi 0, %s79
      %s83 = sphi 0, %s82
      %s99 = sphi 0, %s83
    $region4: #{tpu_custom_call.1} parent=1 // loop_header_branch
      %20 = sbr.rel (%p18) target = $region8
    $region5: #{tpu_custom_call.1} parent=1 // loop_body
      %s22 = ssub.s32 %s17, 1
      %s23 = ssub.s32 %s17, 2
      %s24 = sadd.s32 %s17, 1
      %s25 = ssub.s32 %s17, %s24
      %p26 = scmp.eq.s32.totalorder %s25, 0
      %s28 = sadd.s32 %s27, 1
      %s29 = scalar_select %p26, %s27, %s28
      %p32 = pneg %p26
      %p33 = scmp.eq.s32.totalorder %s17, 1
      %p34 = por %p32, %p33
      %p35 = scmp.ne.s32.totalorder %s27, %s30
      %p36 = scmp.eq.s32.totalorder %s17, 0
      %p37 = por %p35, %p36
      %p38 = scmp.ne.s32.totalorder %s27, %s30
      %p39 = scmp.eq.s32.totalorder %s22, 1
      %p40 = por %p38, %p39
      %p41 = scmp.ne.s32.totalorder %s30, %s31
      %p42 = scmp.eq.s32.totalorder %s22, 0
      %p43 = por %p41, %p42
      %p44 = scmp.ne.s32.totalorder %s30, %s31
      %p45 = scmp.eq.s32.totalorder %s23, 1
      %p46 = por %p44, %p45
      %p48 = scmp.ne.s32.totalorder %s31, %s47
      %p49 = scmp.eq.s32.totalorder %s23, 0
      %p50 = por %p48, %p49
      %s51 = ssub.s32 %s17, %s24
      %p52 = scmp.eq.s32.totalorder %s51, 0
      %s54 = sadd.s32 %s53, 1
      %s55 = scalar_select %p52, %s53, %s54
      %p58 = pneg %p52
      %p59 = scmp.eq.s32.totalorder %s17, 1
      %p60 = por %p58, %p59
      %p61 = scmp.ne.s32.totalorder %s53, %s56
      %p62 = scmp.eq.s32.totalorder %s17, 0
      %p63 = por %p61, %p62
      %p64 = scmp.ne.s32.totalorder %s53, %s56
      %p65 = scmp.eq.s32.totalorder %s22, 1
      %p66 = por %p64, %p65
      %p67 = scmp.ne.s32.totalorder %s56, %s57
      %p68 = scmp.eq.s32.totalorder %s22, 0
      %p69 = por %p67, %p68
      %p70 = scmp.ne.s32.totalorder %s56, %s57
      %p71 = scmp.eq.s32.totalorder %s23, 1
      %p72 = por %p70, %p71
      %p74 = scmp.ne.s32.totalorder %s57, %s73
      %p75 = scmp.eq.s32.totalorder %s23, 0
      %p76 = por %p74, %p75
      %s77 = ssub.s32 %s17, %s24
      %p78 = scmp.eq.s32.totalorder %s77, 0
      %s80 = sadd.s32 %s79, 1
      %s81 = scalar_select %p78, %s79, %s80
      %p84 = pneg %p78
      %p85 = scmp.eq.s32.totalorder %s17, 1
      %p86 = por %p84, %p85
      %p87 = scmp.ne.s32.totalorder %s79, %s82
      %p88 = scmp.eq.s32.totalorder %s17, 0
      %p89 = por %p87, %p88
      %p90 = scmp.ne.s32.totalorder %s79, %s82
      %p91 = scmp.eq.s32.totalorder %s22, 1
      %p92 = por %p90, %p91
      %p93 = scmp.ne.s32.totalorder %s82, %s83
      %p94 = scmp.eq.s32.totalorder %s22, 0
      %p95 = por %p93, %p94
      %p96 = scmp.ne.s32.totalorder %s82, %s83
      %p97 = scmp.eq.s32.totalorder %s23, 1
      %p98 = por %p96, %p97
      %p100 = scmp.ne.s32.totalorder %s83, %s99
      %p101 = scmp.eq.s32.totalorder %s23, 0
      %p102 = por %p100, %p101
      %p103 = scmp.le.s32.totalorder 1, %s17
      %p104 = scmp.lt.s32.totalorder %s17, 3
      %p105 = pnand %p103, %p104
      %p106 = pneg %p105
      // Predicated region
      $region9: #{tpu_custom_call.1} parent=5 // pred_check
        _
      $region10: #{tpu_custom_call.1} parent=5 // pred_check_branch
        %108 = sbr.rel (%p105) target = $region12
      $region11: #{tpu_custom_call.1} parent=5 // pred_region
        %s109 = ssub.s32 %s17, 1
      $region12: #{tpu_custom_call.1} parent=5 // pred_fallthru
        _
      %p110 = scmp.lt.s32.totalorder %s17, 2
      // Predicated region
      $region13: #{tpu_custom_call.1} parent=5 // pred_check
        %p111 = pneg %p110
      $region14: #{tpu_custom_call.1} parent=5 // pred_check_branch
        %113 = sbr.rel (%p111) target = $region16
      $region15: #{tpu_custom_call.1} parent=5 // pred_region
        // Predicated region
        $region17: #{tpu_custom_call.1} parent=15 // pred_check
          %p114 = pneg %p37
        $region18: #{tpu_custom_call.1} parent=15 // pred_check_branch
          %116 = sbr.rel (%p114) target = $region20
        $region19: #{tpu_custom_call.1} parent=15 // pred_region
          %s117 = sand.u32 %s27, 1
          %s118 = scalar_lea.sflag [#allocation3], %s117
          %s119 = sand.u32 %s27, 1
          %s120 = smul.addr %s119, 256
          %s121 = scalar_lea.vmem [#allocation2], %s120
          %s122 = smul.u32 8, %s17
          %s123 = ssub.s32 12, %s122
          %p124 = scmp.lt.s32.totalorder %s123, 8
          %s125 = scalar_select %p124, %s123, 8
          %s126 = smul.u32 128, %s125
          %s127 = smul.u32 %s126, 4
          %s129 = ssub.s32 4096, %s127
          %130 = vsyncadd %s118, %s129
          %p131 = scmp.ne.s32.totalorder 0, %s127
          %s132 = smul.addr %s122, 4
          %s133 = smul.addr %s132, 128
          %s134 = scalar_lea.hbm %s0, %s133
          %s135 = smul.u32 32, %s125
          %s136 = sshll.u32 %s121, 4
          %s137 = int_to_ptr.vmem [resolvable:$true] %s136
          %s138 = sshll.u32 %s135, 4
          %142 = dma.hbm_to_vmem [thread:$0]  (%p131), %s134, %s138, %s137, %s118, 512, 512, 32
        $region20: #{tpu_custom_call.1} parent=15 // pred_fallthru
          _
        // Predicated region
        $region21: #{tpu_custom_call.1} parent=15 // pred_check
          %p143 = pneg %p63
        $region22: #{tpu_custom_call.1} parent=15 // pred_check_branch
          %145 = sbr.rel (%p143) target = $region24
        $region23: #{tpu_custom_call.1} parent=15 // pred_region
          %s146 = sand.u32 %s53, 1
          %s147 = scalar_lea.sflag [#allocation6], %s146
          %s148 = sand.u32 %s53, 1
          %s149 = smul.addr %s148, 256
          %s150 = scalar_lea.vmem [#allocation5], %s149
          %s151 = smul.u32 8, %s17
          %s152 = ssub.s32 12, %s151
          %p153 = scmp.lt.s32.totalorder %s152, 8
          %s154 = scalar_select %p153, %s152, 8
          %s155 = smul.u32 128, %s154
          %s156 = smul.u32 %s155, 4
          %s158 = ssub.s32 4096, %s156
          %159 = vsyncadd %s147, %s158
          %p160 = scmp.ne.s32.totalorder 0, %s156
          %s161 = smul.addr %s151, 4
          %s162 = smul.addr %s161, 128
          %s163 = scalar_lea.hbm %s1, %s162
          %s164 = smul.u32 32, %s154
          %s165 = sshll.u32 %s150, 4
          %s166 = int_to_ptr.vmem [resolvable:$true] %s165
          %s167 = sshll.u32 %s164, 4
          %171 = dma.hbm_to_vmem [thread:$0]  (%p160), %s163, %s167, %s166, %s147, 512, 512, 32
        $region24: #{tpu_custom_call.1} parent=15 // pred_fallthru
          _
      $region16: #{tpu_custom_call.1} parent=5 // pred_fallthru
        _
      %p172 = scmp.le.s32.totalorder 1, %s17
      %p173 = scmp.lt.s32.totalorder %s17, 3
      %p174 = pnand %p172, %p173
      %p175 = pneg %p174
      // Predicated region
      $region25: #{tpu_custom_call.1} parent=5 // pred_check
        _
      $region26: #{tpu_custom_call.1} parent=5 // pred_check_branch
        %177 = sbr.rel (%p174) target = $region28
      $region27: #{tpu_custom_call.1} parent=5 // pred_region
        %s178 = ssub.s32 %s17, 1
        %s179 = sand.u32 %s30, 1
        %s180 = scalar_lea.sflag [#allocation3], %s179
        %s181 = sand.u32 %s30, 1
        %s182 = smul.addr %s181, 256
        %s183 = scalar_lea.vmem [#allocation2], %s182
        // Predicated region
        $region29: #{tpu_custom_call.1} parent=27 // pred_check
          %p184 = pneg %p43
        $region30: #{tpu_custom_call.1} parent=27 // pred_check_branch
          %186 = sbr.rel (%p184) target = $region32
        $region31: #{tpu_custom_call.1} parent=27 // pred_region
          %187 = dma.done %s180, 4096
        $region32: #{tpu_custom_call.1} parent=27 // pred_fallthru
          _
        %s188 = sand.u32 %s56, 1
        %s189 = scalar_lea.sflag [#allocation6], %s188
        %s190 = sand.u32 %s56, 1
        %s191 = smul.addr %s190, 256
        %s192 = scalar_lea.vmem [#allocation5], %s191
        // Predicated region
        $region33: #{tpu_custom_call.1} parent=27 // pred_check
          %p193 = pneg %p69
        $region34: #{tpu_custom_call.1} parent=27 // pred_check_branch
          %195 = sbr.rel (%p193) target = $region36
        $region35: #{tpu_custom_call.1} parent=27 // pred_region
          %196 = dma.done %s189, 4096
        $region36: #{tpu_custom_call.1} parent=27 // pred_fallthru
          _
        %s197 = sand.u32 %s30, 1
        %s198 = scalar_lea.sflag [#allocation3], %s197
        %s199 = sand.u32 %s30, 1
        %s200 = smul.addr %s199, 256
        %s201 = scalar_lea.vmem [#allocation2], %s200
        %p202 = pneg %p43
        %p203 = pneg %p40
        %s204 = sand.u32 %s56, 1
        %s205 = scalar_lea.sflag [#allocation6], %s204
        %s206 = sand.u32 %s56, 1
        %s207 = smul.addr %s206, 256
        %s208 = scalar_lea.vmem [#allocation5], %s207
        %p209 = pneg %p69
        %p210 = pneg %p66
        %p211 = pneg %p95
        %p212 = pneg %p92
        %s213 = sand.u32 %s82, 1
        %s214 = scalar_lea.sflag [#allocation4], %s213
        %s215 = sand.u32 %s82, 1
        %s216 = smul.addr %s215, 32
        %s217 = scalar_lea.vmem [#allocation7], %s216
        %s218 = smul.u32 8, %s22
        %s219 = ssub.s32 12, %s218
        %p220 = scmp.lt.s32.totalorder %s219, 8
        %s221 = scalar_select %p220, %s219, 8
        %s222 = smul.u32 128, %s221
        %s223 = smul.u32 %s222, 4
        %s224 = smul.u32 8, %s22
        %s225 = ssub.s32 12, %s224
        %p226 = scmp.lt.s32.totalorder %s225, 8
        %s227 = scalar_select %p226, %s225, 8
        %s228 = smul.u32 128, %s227
        %s229 = smul.u32 %s228, 4
        %v230 = vld [vmem:[%s183] sm:$0xff]
        %v231 = vld [vmem:[%s183 + $0x8] sm:$0xff]
        %v232 = vld [vmem:[%s183 + $0x10] sm:$0xff]
        %v233 = vld [vmem:[%s183 + $0x18] sm:$0xff]
        %v234 = vld [vmem:[%s183 + $0x20] sm:$0xff]
        %v235 = vld [vmem:[%s183 + $0x28] sm:$0xff]
        %v236 = vld [vmem:[%s183 + $0x30] sm:$0xff]
        %v237 = vld [vmem:[%s183 + $0x38] sm:$0xff]
        %v238 = vld [vmem:[%s183 + $0x40] sm:$0xff]
        %v239 = vld [vmem:[%s183 + $0x48] sm:$0xff]
        %v240 = vld [vmem:[%s183 + $0x50] sm:$0xff]
        %v241 = vld [vmem:[%s183 + $0x58] sm:$0xff]
        %v242 = vld [vmem:[%s183 + $0x60] sm:$0xff]
        %v243 = vld [vmem:[%s183 + $0x68] sm:$0xff]
        %v244 = vld [vmem:[%s183 + $0x70] sm:$0xff]
        %v245 = vld [vmem:[%s183 + $0x78] sm:$0xff]
        %v246 = vld [vmem:[%s183 + $0x80] sm:$0xff]
        %v247 = vld [vmem:[%s183 + $0x88] sm:$0xff]
        %v248 = vld [vmem:[%s183 + $0x90] sm:$0xff]
        %v249 = vld [vmem:[%s183 + $0x98] sm:$0xff]
        %v250 = vld [vmem:[%s183 + $0xa0] sm:$0xff]
        %v251 = vld [vmem:[%s183 + $0xa8] sm:$0xff]
        %v252 = vld [vmem:[%s183 + $0xb0] sm:$0xff]
        %v253 = vld [vmem:[%s183 + $0xb8] sm:$0xff]
        %v254 = vld [vmem:[%s183 + $0xc0] sm:$0xff]
        %v255 = vld [vmem:[%s183 + $0xc8] sm:$0xff]
        %v256 = vld [vmem:[%s183 + $0xd0] sm:$0xff]
        %v257 = vld [vmem:[%s183 + $0xd8] sm:$0xff]
        %v258 = vld [vmem:[%s183 + $0xe0] sm:$0xff]
        %v259 = vld [vmem:[%s183 + $0xe8] sm:$0xff]
        %v260 = vld [vmem:[%s183 + $0xf0] sm:$0xff]
        %v261 = vld [vmem:[%s183 + $0xf8] sm:$0xff]
        %v262 = vld [vmem:[%s192] sm:$0xff]
        %v263 = vld [vmem:[%s192 + $0x8] sm:$0xff]
        %v264 = vld [vmem:[%s192 + $0x10] sm:$0xff]
        %v265 = vld [vmem:[%s192 + $0x18] sm:$0xff]
        %v266 = vld [vmem:[%s192 + $0x20] sm:$0xff]
        %v267 = vld [vmem:[%s192 + $0x28] sm:$0xff]
        %v268 = vld [vmem:[%s192 + $0x30] sm:$0xff]
        %v269 = vld [vmem:[%s192 + $0x38] sm:$0xff]
        %v270 = vld [vmem:[%s192 + $0x40] sm:$0xff]
        %v271 = vld [vmem:[%s192 + $0x48] sm:$0xff]
        %v272 = vld [vmem:[%s192 + $0x50] sm:$0xff]
        %v273 = vld [vmem:[%s192 + $0x58] sm:$0xff]
        %v274 = vld [vmem:[%s192 + $0x60] sm:$0xff]
        %v275 = vld [vmem:[%s192 + $0x68] sm:$0xff]
        %v276 = vld [vmem:[%s192 + $0x70] sm:$0xff]
        %v277 = vld [vmem:[%s192 + $0x78] sm:$0xff]
        %v278 = vld [vmem:[%s192 + $0x80] sm:$0xff]
        %v279 = vld [vmem:[%s192 + $0x88] sm:$0xff]
        %v280 = vld [vmem:[%s192 + $0x90] sm:$0xff]
        %v281 = vld [vmem:[%s192 + $0x98] sm:$0xff]
        %v282 = vld [vmem:[%s192 + $0xa0] sm:$0xff]
        %v283 = vld [vmem:[%s192 + $0xa8] sm:$0xff]
        %v284 = vld [vmem:[%s192 + $0xb0] sm:$0xff]
        %v285 = vld [vmem:[%s192 + $0xb8] sm:$0xff]
        %v286 = vld [vmem:[%s192 + $0xc0] sm:$0xff]
        %v287 = vld [vmem:[%s192 + $0xc8] sm:$0xff]
        %v288 = vld [vmem:[%s192 + $0xd0] sm:$0xff]
        %v289 = vld [vmem:[%s192 + $0xd8] sm:$0xff]
        %v290 = vld [vmem:[%s192 + $0xe0] sm:$0xff]
        %v291 = vld [vmem:[%s192 + $0xe8] sm:$0xff]
        %v292 = vld [vmem:[%s192 + $0xf0] sm:$0xff]
        %v293 = vld [vmem:[%s192 + $0xf8] sm:$0xff]
        %v294 = vsub.f32 0.5, %v230
        %v295 = vsub.f32 0.5, %v231
        %v296 = vsub.f32 0.5, %v232
        %v297 = vsub.f32 0.5, %v233
        %v298 = vsub.f32 0.5, %v234
        %v299 = vsub.f32 0.5, %v235
        %v300 = vsub.f32 0.5, %v236
        %v301 = vsub.f32 0.5, %v237
        %v302 = vsub.f32 0.5, %v238
        %v303 = vsub.f32 0.5, %v239
        %v304 = vsub.f32 0.5, %v240
        %v305 = vsub.f32 0.5, %v241
        %v306 = vsub.f32 0.5, %v242
        %v307 = vsub.f32 0.5, %v243
        %v308 = vsub.f32 0.5, %v244
        %v309 = vsub.f32 0.5, %v245
        %v310 = vsub.f32 0.5, %v246
        %v311 = vsub.f32 0.5, %v247
        %v312 = vsub.f32 0.5, %v248
        %v313 = vsub.f32 0.5, %v249
        %v314 = vsub.f32 0.5, %v250
        %v315 = vsub.f32 0.5, %v251
        %v316 = vsub.f32 0.5, %v252
        %v317 = vsub.f32 0.5, %v253
        %v318 = vsub.f32 0.5, %v254
        %v319 = vsub.f32 0.5, %v255
        %v320 = vsub.f32 0.5, %v256
        %v321 = vsub.f32 0.5, %v257
        %v322 = vsub.f32 0.5, %v258
        %v323 = vsub.f32 0.5, %v259
        %v324 = vsub.f32 0.5, %v260
        %v325 = vsub.f32 0.5, %v261
        %v326 = vmax.f32 %v294, 0.0
        %v327 = vmax.f32 %v295, 0.0
        %v328 = vmax.f32 %v296, 0.0
        %v329 = vmax.f32 %v297, 0.0
        %v330 = vmax.f32 %v298, 0.0
        %v331 = vmax.f32 %v299, 0.0
        %v332 = vmax.f32 %v300, 0.0
        %v333 = vmax.f32 %v301, 0.0
        %v334 = vmax.f32 %v302, 0.0
        %v335 = vmax.f32 %v303, 0.0
        %v336 = vmax.f32 %v304, 0.0
        %v337 = vmax.f32 %v305, 0.0
        %v338 = vmax.f32 %v306, 0.0
        %v339 = vmax.f32 %v307, 0.0
        %v340 = vmax.f32 %v308, 0.0
        %v341 = vmax.f32 %v309, 0.0
        %v342 = vmax.f32 %v310, 0.0
        %v343 = vmax.f32 %v311, 0.0
        %v344 = vmax.f32 %v312, 0.0
        %v345 = vmax.f32 %v313, 0.0
        %v346 = vmax.f32 %v314, 0.0
        %v347 = vmax.f32 %v315, 0.0
        %v348 = vmax.f32 %v316, 0.0
        %v349 = vmax.f32 %v317, 0.0
        %v350 = vmax.f32 %v318, 0.0
        %v351 = vmax.f32 %v319, 0.0
        %v352 = vmax.f32 %v320, 0.0
        %v353 = vmax.f32 %v321, 0.0
        %v354 = vmax.f32 %v322, 0.0
        %v355 = vmax.f32 %v323, 0.0
        %v356 = vmax.f32 %v324, 0.0
        %v357 = vmax.f32 %v325, 0.0
        %v358 = vsub.f32 1.0, %v262
        %v359 = vsub.f32 1.0, %v263
        %v360 = vsub.f32 1.0, %v264
        %v361 = vsub.f32 1.0, %v265
        %v362 = vsub.f32 1.0, %v266
        %v363 = vsub.f32 1.0, %v267
        %v364 = vsub.f32 1.0, %v268
        %v365 = vsub.f32 1.0, %v269
        %v366 = vsub.f32 1.0, %v270
        %v367 = vsub.f32 1.0, %v271
        %v368 = vsub.f32 1.0, %v272
        %v369 = vsub.f32 1.0, %v273
        %v370 = vsub.f32 1.0, %v274
        %v371 = vsub.f32 1.0, %v275
        %v372 = vsub.f32 1.0, %v276
        %v373 = vsub.f32 1.0, %v277
        %v374 = vsub.f32 1.0, %v278
        %v375 = vsub.f32 1.0, %v279
        %v376 = vsub.f32 1.0, %v280
        %v377 = vsub.f32 1.0, %v281
        %v378 = vsub.f32 1.0, %v282
        %v379 = vsub.f32 1.0, %v283
        %v380 = vsub.f32 1.0, %v284
        %v381 = vsub.f32 1.0, %v285
        %v382 = vsub.f32 1.0, %v286
        %v383 = vsub.f32 1.0, %v287
        %v384 = vsub.f32 1.0, %v288
        %v385 = vsub.f32 1.0, %v289
        %v386 = vsub.f32 1.0, %v290
        %v387 = vsub.f32 1.0, %v291
        %v388 = vsub.f32 1.0, %v292
        %v389 = vsub.f32 1.0, %v293
        %v390 = vmul.f32 %v230, %v230
        %v391 = vmul.f32 %v231, %v231
        %v392 = vmul.f32 %v232, %v232
        %v393 = vmul.f32 %v233, %v233
        %v394 = vmul.f32 %v234, %v234
        %v395 = vmul.f32 %v235, %v235
        %v396 = vmul.f32 %v236, %v236
        %v397 = vmul.f32 %v237, %v237
        %v398 = vmul.f32 %v238, %v238
        %v399 = vmul.f32 %v239, %v239
        %v400 = vmul.f32 %v240, %v240
        %v401 = vmul.f32 %v241, %v241
        %v402 = vmul.f32 %v242, %v242
        %v403 = vmul.f32 %v243, %v243
        %v404 = vmul.f32 %v244, %v244
        %v405 = vmul.f32 %v245, %v245
        %v406 = vmul.f32 %v246, %v246
        %v407 = vmul.f32 %v247, %v247
        %v408 = vmul.f32 %v248, %v248
        %v409 = vmul.f32 %v249, %v249
        %v410 = vmul.f32 %v250, %v250
        %v411 = vmul.f32 %v251, %v251
        %v412 = vmul.f32 %v252, %v252
        %v413 = vmul.f32 %v253, %v253
        %v414 = vmul.f32 %v254, %v254
        %v415 = vmul.f32 %v255, %v255
        %v416 = vmul.f32 %v256, %v256
        %v417 = vmul.f32 %v257, %v257
        %v418 = vmul.f32 %v258, %v258
        %v419 = vmul.f32 %v259, %v259
        %v420 = vmul.f32 %v260, %v260
        %v421 = vmul.f32 %v261, %v261
        %v422 = vmul.f32 %v358, %v390
        %v423 = vmul.f32 %v359, %v391
        %v424 = vmul.f32 %v360, %v392
        %v425 = vmul.f32 %v361, %v393
        %v426 = vmul.f32 %v362, %v394
        %v427 = vmul.f32 %v363, %v395
        %v428 = vmul.f32 %v364, %v396
        %v429 = vmul.f32 %v365, %v397
        %v430 = vmul.f32 %v366, %v398
        %v431 = vmul.f32 %v367, %v399
        %v432 = vmul.f32 %v368, %v400
        %v433 = vmul.f32 %v369, %v401
        %v434 = vmul.f32 %v370, %v402
        %v435 = vmul.f32 %v371, %v403
        %v436 = vmul.f32 %v372, %v404
        %v437 = vmul.f32 %v373, %v405
        %v438 = vmul.f32 %v374, %v406
        %v439 = vmul.f32 %v375, %v407
        %v440 = vmul.f32 %v376, %v408
        %v441 = vmul.f32 %v377, %v409
        %v442 = vmul.f32 %v378, %v410
        %v443 = vmul.f32 %v379, %v411
        %v444 = vmul.f32 %v380, %v412
        %v445 = vmul.f32 %v381, %v413
        %v446 = vmul.f32 %v382, %v414
        %v447 = vmul.f32 %v383, %v415
        %v448 = vmul.f32 %v384, %v416
        %v449 = vmul.f32 %v385, %v417
        %v450 = vmul.f32 %v386, %v418
        %v451 = vmul.f32 %v387, %v419
        %v452 = vmul.f32 %v388, %v420
        %v453 = vmul.f32 %v389, %v421
        %v454 = vmul.f32 %v326, %v326
        %v455 = vmul.f32 %v327, %v327
        %v456 = vmul.f32 %v328, %v328
        %v457 = vmul.f32 %v329, %v329
        %v458 = vmul.f32 %v330, %v330
        %v459 = vmul.f32 %v331, %v331
        %v460 = vmul.f32 %v332, %v332
        %v461 = vmul.f32 %v333, %v333
        %v462 = vmul.f32 %v334, %v334
        %v463 = vmul.f32 %v335, %v335
        %v464 = vmul.f32 %v336, %v336
        %v465 = vmul.f32 %v337, %v337
        %v466 = vmul.f32 %v338, %v338
        %v467 = vmul.f32 %v339, %v339
        %v468 = vmul.f32 %v340, %v340
        %v469 = vmul.f32 %v341, %v341
        %v470 = vmul.f32 %v342, %v342
        %v471 = vmul.f32 %v343, %v343
        %v472 = vmul.f32 %v344, %v344
        %v473 = vmul.f32 %v345, %v345
        %v474 = vmul.f32 %v346, %v346
        %v475 = vmul.f32 %v347, %v347
        %v476 = vmul.f32 %v348, %v348
        %v477 = vmul.f32 %v349, %v349
        %v478 = vmul.f32 %v350, %v350
        %v479 = vmul.f32 %v351, %v351
        %v480 = vmul.f32 %v352, %v352
        %v481 = vmul.f32 %v353, %v353
        %v482 = vmul.f32 %v354, %v354
        %v483 = vmul.f32 %v355, %v355
        %v484 = vmul.f32 %v356, %v356
        %v485 = vmul.f32 %v357, %v357
        %v486 = vmul.f32 %v262, %v454
        %v487 = vmul.f32 %v263, %v455
        %v488 = vmul.f32 %v264, %v456
        %v489 = vmul.f32 %v265, %v457
        %v490 = vmul.f32 %v266, %v458
        %v491 = vmul.f32 %v267, %v459
        %v492 = vmul.f32 %v268, %v460
        %v493 = vmul.f32 %v269, %v461
        %v494 = vmul.f32 %v270, %v462
        %v495 = vmul.f32 %v271, %v463
        %v496 = vmul.f32 %v272, %v464
        %v497 = vmul.f32 %v273, %v465
        %v498 = vmul.f32 %v274, %v466
        %v499 = vmul.f32 %v275, %v467
        %v500 = vmul.f32 %v276, %v468
        %v501 = vmul.f32 %v277, %v469
        %v502 = vmul.f32 %v278, %v470
        %v503 = vmul.f32 %v279, %v471
        %v504 = vmul.f32 %v280, %v472
        %v505 = vmul.f32 %v281, %v473
        %v506 = vmul.f32 %v282, %v474
        %v507 = vmul.f32 %v283, %v475
        %v508 = vmul.f32 %v284, %v476
        %v509 = vmul.f32 %v285, %v477
        %v510 = vmul.f32 %v286, %v478
        %v511 = vmul.f32 %v287, %v479
        %v512 = vmul.f32 %v288, %v480
        %v513 = vmul.f32 %v289, %v481
        %v514 = vmul.f32 %v290, %v482
        %v515 = vmul.f32 %v291, %v483
        %v516 = vmul.f32 %v292, %v484
        %v517 = vmul.f32 %v293, %v485
        %v518 = vadd.f32 %v422, %v486
        %v519 = vadd.f32 %v423, %v487
        %v520 = vadd.f32 %v424, %v488
        %v521 = vadd.f32 %v425, %v489
        %v522 = vadd.f32 %v426, %v490
        %v523 = vadd.f32 %v427, %v491
        %v524 = vadd.f32 %v428, %v492
        %v525 = vadd.f32 %v429, %v493
        %v526 = vadd.f32 %v430, %v494
        %v527 = vadd.f32 %v431, %v495
        %v528 = vadd.f32 %v432, %v496
        %v529 = vadd.f32 %v433, %v497
        %v530 = vadd.f32 %v434, %v498
        %v531 = vadd.f32 %v435, %v499
        %v532 = vadd.f32 %v436, %v500
        %v533 = vadd.f32 %v437, %v501
        %v534 = vadd.f32 %v438, %v502
        %v535 = vadd.f32 %v439, %v503
        %v536 = vadd.f32 %v440, %v504
        %v537 = vadd.f32 %v441, %v505
        %v538 = vadd.f32 %v442, %v506
        %v539 = vadd.f32 %v443, %v507
        %v540 = vadd.f32 %v444, %v508
        %v541 = vadd.f32 %v445, %v509
        %v542 = vadd.f32 %v446, %v510
        %v543 = vadd.f32 %v447, %v511
        %v544 = vadd.f32 %v448, %v512
        %v545 = vadd.f32 %v449, %v513
        %v546 = vadd.f32 %v450, %v514
        %v547 = vadd.f32 %v451, %v515
        %v548 = vadd.f32 %v452, %v516
        %v549 = vadd.f32 %v453, %v517
        %p550 = scmp.eq.s32.totalorder %s22, 1
        %p551 = scmp.ne.s32.totalorder %s22, 1
        // Predicated region
        $region37: #{tpu_custom_call.1} parent=27 // pred_check
          %p552 = pneg %p551
        $region38: #{tpu_custom_call.1} parent=27 // pred_check_branch
          %554 = sbr.rel (%p552) target = $region40
        $region39: #{tpu_custom_call.1} parent=27 // pred_region
          %v555 = vadd.f32 %v518, %v522
          %v556 = vadd.f32 %v555, %v526
          %v557 = vadd.f32 %v556, %v530
          %v558 = vadd.f32 %v557, %v534
          %v559 = vadd.f32 %v558, %v538
          %v560 = vadd.f32 %v559, %v542
          %v561 = vadd.f32 %v560, %v546
          %v562 = vadd.f32 %v519, %v523
          %v563 = vadd.f32 %v562, %v527
          %v564 = vadd.f32 %v563, %v531
          %v565 = vadd.f32 %v564, %v535
          %v566 = vadd.f32 %v565, %v539
          %v567 = vadd.f32 %v566, %v543
          %v568 = vadd.f32 %v567, %v547
          %v569 = vadd.f32 %v520, %v524
          %v570 = vadd.f32 %v569, %v528
          %v571 = vadd.f32 %v570, %v532
          %v572 = vadd.f32 %v571, %v536
          %v573 = vadd.f32 %v572, %v540
          %v574 = vadd.f32 %v573, %v544
          %v575 = vadd.f32 %v574, %v548
          %v576 = vadd.f32 %v521, %v525
          %v577 = vadd.f32 %v576, %v529
          %v578 = vadd.f32 %v577, %v533
          %v579 = vadd.f32 %v578, %v537
          %v580 = vadd.f32 %v579, %v541
          %v581 = vadd.f32 %v580, %v545
          %v582 = vadd.f32 %v581, %v549
          %583 = vst [vmem:[%s217] sm:$0xff] %v561
          %584 = vst [vmem:[%s217 + $0x8] sm:$0xff] %v568
          %585 = vst [vmem:[%s217 + $0x10] sm:$0xff] %v575
          %586 = vst [vmem:[%s217 + $0x18] sm:$0xff] %v582
        $region40: #{tpu_custom_call.1} parent=27 // pred_fallthru
          _
        // Predicated region
        $region41: #{tpu_custom_call.1} parent=27 // pred_check
          %p587 = pneg %p550
        $region42: #{tpu_custom_call.1} parent=27 // pred_check_branch
          %589 = sbr.rel (%p587) target = $region44
        $region43: #{tpu_custom_call.1} parent=27 // pred_region
          %v590 = vlaneseq
          %v591 = vshrl.u32 %v590, 7
          %v592 = vadd.s32 %v591, 8
          %v593 = vadd.s32 %v591, 16
          %v594 = vadd.s32 %v591, 24
          %v595 = vadd.s32 %v591, 32
          %v596 = vadd.s32 %v591, 40
          %v597 = vadd.s32 %v591, 48
          %v598 = vadd.s32 %v591, 56
          %vm599 = vcmp.lt.s32.totalorder %v591, 32
          %vm600 = vcmp.lt.s32.totalorder %v592, 32
          %vm601 = vcmp.lt.s32.totalorder %v593, 32
          %vm602 = vcmp.lt.s32.totalorder %v594, 32
          %vm603 = vcmp.lt.s32.totalorder %v595, 32
          %vm604 = vcmp.lt.s32.totalorder %v596, 32
          %vm605 = vcmp.lt.s32.totalorder %v597, 32
          %vm606 = vcmp.lt.s32.totalorder %v598, 32
          %v607 = vsel %vm599, %v518, 0.0
          %v608 = vsel %vm599, %v519, 0.0
          %v609 = vsel %vm599, %v520, 0.0
          %v610 = vsel %vm599, %v521, 0.0
          %v611 = vsel %vm600, %v522, 0.0
          %v612 = vsel %vm600, %v523, 0.0
          %v613 = vsel %vm600, %v524, 0.0
          %v614 = vsel %vm600, %v525, 0.0
          %v615 = vsel %vm601, %v526, 0.0
          %v616 = vsel %vm601, %v527, 0.0
          %v617 = vsel %vm601, %v528, 0.0
          %v618 = vsel %vm601, %v529, 0.0
          %v619 = vsel %vm602, %v530, 0.0
          %v620 = vsel %vm602, %v531, 0.0
          %v621 = vsel %vm602, %v532, 0.0
          %v622 = vsel %vm602, %v533, 0.0
          %v623 = vsel %vm603, %v534, 0.0
          %v624 = vsel %vm603, %v535, 0.0
          %v625 = vsel %vm603, %v536, 0.0
          %v626 = vsel %vm603, %v537, 0.0
          %v627 = vsel %vm604, %v538, 0.0
          %v628 = vsel %vm604, %v539, 0.0
          %v629 = vsel %vm604, %v540, 0.0
          %v630 = vsel %vm604, %v541, 0.0
          %v631 = vsel %vm605, %v542, 0.0
          %v632 = vsel %vm605, %v543, 0.0
          %v633 = vsel %vm605, %v544, 0.0
          %v634 = vsel %vm605, %v545, 0.0
          %v635 = vsel %vm606, %v546, 0.0
          %v636 = vsel %vm606, %v547, 0.0
          %v637 = vsel %vm606, %v548, 0.0
          %v638 = vsel %vm606, %v549, 0.0
          %v639 = vadd.f32 %v607, %v611
          %v640 = vadd.f32 %v639, %v615
          %v641 = vadd.f32 %v640, %v619
          %v642 = vadd.f32 %v641, %v623
          %v643 = vadd.f32 %v642, %v627
          %v644 = vadd.f32 %v643, %v631
          %v645 = vadd.f32 %v644, %v635
          %v646 = vadd.f32 %v608, %v612
          %v647 = vadd.f32 %v646, %v616
          %v648 = vadd.f32 %v647, %v620
          %v649 = vadd.f32 %v648, %v624
          %v650 = vadd.f32 %v649, %v628
          %v651 = vadd.f32 %v650, %v632
          %v652 = vadd.f32 %v651, %v636
          %v653 = vadd.f32 %v609, %v613
          %v654 = vadd.f32 %v653, %v617
          %v655 = vadd.f32 %v654, %v621
          %v656 = vadd.f32 %v655, %v625
          %v657 = vadd.f32 %v656, %v629
          %v658 = vadd.f32 %v657, %v633
          %v659 = vadd.f32 %v658, %v637
          %v660 = vadd.f32 %v610, %v614
          %v661 = vadd.f32 %v660, %v618
          %v662 = vadd.f32 %v661, %v622
          %v663 = vadd.f32 %v662, %v626
          %v664 = vadd.f32 %v663, %v630
          %v665 = vadd.f32 %v664, %v634
          %v666 = vadd.f32 %v665, %v638
          %667 = vst [vmem:[%s217] sm:$0xff] %v645
          %668 = vst [vmem:[%s217 + $0x8] sm:$0xff] %v652
          %669 = vst [vmem:[%s217 + $0x10] sm:$0xff] %v659
          %670 = vst [vmem:[%s217 + $0x18] sm:$0xff] %v666
        $region44: #{tpu_custom_call.1} parent=27 // pred_fallthru
          _
        %s671 = sand.u32 %s82, 1
        %s672 = scalar_lea.sflag [#allocation4], %s671
        %s673 = sand.u32 %s82, 1
        %s674 = smul.addr %s673, 32
        %s675 = scalar_lea.vmem [#allocation7], %s674
        // Predicated region
        $region45: #{tpu_custom_call.1} parent=27 // pred_check
          %p676 = pneg %p92
        $region46: #{tpu_custom_call.1} parent=27 // pred_check_branch
          %678 = sbr.rel (%p676) target = $region48
        $region47: #{tpu_custom_call.1} parent=27 // pred_region
          %s680 = ssub.s32 512, 512
          %681 = vsyncadd %s672, %s680
          %s682 = smul.addr %s22, 4
          %s683 = smul.addr %s682, 128
          %s684 = scalar_lea.hbm %s2, %s683
          %s686 = sshll.u32 %s675, 4
          %s687 = int_to_ptr.vmem [resolvable:$true] %s686
          %689 = dma.vmem_to_hbm [thread:$0]  %s687, 512, %s684, %s672
        $region48: #{tpu_custom_call.1} parent=27 // pred_fallthru
          _
      $region28: #{tpu_custom_call.1} parent=5 // pred_fallthru
        _
      %p690 = scmp.le.s32.totalorder 2, %s17
      // Predicated region
      $region49: #{tpu_custom_call.1} parent=5 // pred_check
        %p691 = pneg %p690
      $region50: #{tpu_custom_call.1} parent=5 // pred_check_branch
        %693 = sbr.rel (%p691) target = $region52
      $region51: #{tpu_custom_call.1} parent=5 // pred_region
        %s694 = ssub.s32 %s17, 2
        // Predicated region
        $region53: #{tpu_custom_call.1} parent=51 // pred_check
          %p695 = pneg %p98
        $region54: #{tpu_custom_call.1} parent=51 // pred_check_branch
          %697 = sbr.rel (%p695) target = $region56
        $region55: #{tpu_custom_call.1} parent=51 // pred_region
          %s698 = sand.u32 %s83, 1
          %s699 = scalar_lea.sflag [#allocation4], %s698
          %s700 = sand.u32 %s83, 1
          %s701 = smul.addr %s700, 32
          %s702 = scalar_lea.vmem [#allocation7], %s701
          %703 = dma.done %s699, 512
        $region56: #{tpu_custom_call.1} parent=51 // pred_fallthru
          _
      $region52: #{tpu_custom_call.1} parent=5 // pred_fallthru
        _
    $region6: #{tpu_custom_call.1} parent=1 // loop_footer
      %s21 = sadd.s32 1, %s17
    $region7: #{tpu_custom_call.1} parent=1 // loop_footer_branch
      %16 = sbr.rel target = $region3
    $region8: #{tpu_custom_call.1} parent=1 // loop_exit
      _
    %704 = vsyncpa [#allocation3], 1
    %s705 = scalar_lea.sflag [#allocation3], 1
    %706 = vsyncpa %s705, 1
    %707 = vsyncpa [#allocation6], 1
    %s708 = scalar_lea.sflag [#allocation6], 1
    %709 = vsyncpa %s708, 1
    %710 = vsyncpa [#allocation4], 1
    %s711 = scalar_lea.sflag [#allocation4], 1
    %712 = vsyncpa %s711, 1

</llo_original>
